<compile_context>
chip_gen: v5e
topology: v5e:2x2
jax: 0.10.0
libtpu: 0.0.40
codegen_flags: <defaults>
</compile_context>

<pallas_src>
import numpy as np
import jax
import jax.numpy as jnp
from jax import lax
from jax.experimental import pallas as pl
from jax.experimental.pallas import tpu as pltpu

BN_EPS = 1e-3
_REF_PRECISION = jax.lax.Precision.HIGHEST  # reference only


# ------------------------- fused Pallas kernel -------------------------

def _make_decoder_kernel(H, W):
    """Fused DecoderModule forward for one block of images.

    In-kernel activation layout is (C, L): channels on sublanes, flattened
    (folded-batch, H, W) spatial axis on lanes.  L is a multiple of 128 so
    every load/store is lane-dense.
    """

    def kernel(x_ref, mask_ref, w1_ref, b1_ref, w3_ref, b2_ref,
               w2_ref, wo_ref, bo_ref, out_ref):
        cint = w3_ref.shape[1]
        L = x_ref.shape[1]

        x = x_ref[...]                                            # (Cin, L)

        # ---- main path: 1x1 conv (BN1 scale folded in) + shift + ReLU ----
        h1 = jnp.dot(w1_ref[...], x, preferred_element_type=jnp.float32)
        h1 = jnp.maximum(h1 + b1_ref[...], 0.0)                   # (Cint, L)

        # ---- main path: 3x3 conv (stride 1, pad 1, bias) ----
        # One matmul computes the channel mix for all 9 taps at once; the
        # zero-padded spatial shifts are lane-rolls + boundary masks.
        pre = jnp.dot(w3_ref[...], h1,
                      preferred_element_type=jnp.float32)         # (9*Cint, L)
        masks = mask_ref[...]                                     # (9, L)
        h2 = None
        for ky in range(3):
            for kx in range(3):
                k = ky * 3 + kx
                off = (ky - 1) * W + (kx - 1)
                tap = pre[k * cint:(k + 1) * cint, :]             # (Cint, L)
                if off != 0:
                    tap = pltpu.roll(tap, shift=(-off) % L, axis=1)
                    tap = tap * masks[k:k + 1, :]
                h2 = tap if h2 is None else h2 + tap
        h2 = jnp.maximum(h2 + b2_ref[...], 0.0)                   # (Cint, L)

        # ---- output 1x1 (BN3 folded) + other path 1x1 (BNo folded) ----
        main = jnp.dot(w2_ref[...], h2, preferred_element_type=jnp.float32)
        other = jnp.dot(wo_ref[...], x, preferred_element_type=jnp.float32)
        out_ref[...] = jnp.maximum(main + other + bo_ref[...],
                                   0.0).astype(out_ref.dtype)

    return kernel


def _make_tap_masks(H, W, nb):
    """mask[k, p] = 1 iff the 3x3 tap k reads an in-bounds pixel at position p."""
    ys, xs = np.meshgrid(np.arange(H), np.arange(W), indexing="ij")
    ys, xs = ys.reshape(-1), xs.reshape(-1)
    m = np.zeros((9, H * W), np.float32)
    for ky in range(3):
        for kx in range(3):
            dy, dx = ky - 1, kx - 1
            valid = ((ys + dy >= 0) & (ys + dy < H) &
                     (xs + dx >= 0) & (xs + dx < W))
            m[ky * 3 + kx] = valid.astype(np.float32)
    return jnp.asarray(np.tile(m, (1, nb)))


def _bn_fold(gamma, beta, mean, var):
    scale = gamma / jnp.sqrt(var + BN_EPS)
    shift = beta - mean * scale
    return scale, shift


def decoder_forward(x_nchw, params, batch_per_step=1):
    N, Cin, H, W = x_nchw.shape
    Cout = params["w2"].shape[0]
    Cint = params["w1"].shape[0]
    HW = H * W
    nb = batch_per_step
    assert N % nb == 0
    L = nb * HW                  # lanes per grid step (multiple of 128)
    G = N // nb                  # grid steps; keep >=2 when N>=2 (v7x: 2 TCs)

    # NCHW -> channels on sublanes, flattened (batch, spatial) on lanes.
    x_cl = jnp.transpose(x_nchw, (1, 0, 2, 3)).reshape(Cin, N * HW)

    # Fold BN (inference stats) into the adjacent conv weights / biases.
    s1, t1 = _bn_fold(*params["bn1"])
    w1 = params["w1"][:, :, 0, 0] * s1[:, None]                  # (Cint, Cin)
    b1 = t1[:, None]                                             # (Cint, 1)

    s2, t2 = _bn_fold(*params["bn2"])
    w3 = jnp.transpose(params["w3"], (2, 3, 0, 1)).reshape(9 * Cint, Cint)
    w3 = w3 * jnp.tile(s2, 9)[:, None]                           # (9*Cint, Cint)
    b2 = (s2 * params["b3"] + t2)[:, None]                       # (Cint, 1)

    s3, t3 = _bn_fold(*params["bn3"])
    w2 = params["w2"][:, :, 0, 0] * s3[:, None]                  # (Cout, Cint)

    so, to = _bn_fold(*params["bno"])
    wo = params["wo"][:, :, 0, 0] * so[:, None]                  # (Cout, Cin)
    bo = (t3 + to)[:, None]                                      # (Cout, 1)

    masks = _make_tap_masks(H, W, nb)                            # (9, L)

    def const(a):
        return pl.BlockSpec(a.shape, lambda n: (0,) * a.ndim)

    out_cl = pl.pallas_call(
        _make_decoder_kernel(H, W),
        out_shape=jax.ShapeDtypeStruct((Cout, N * HW), jnp.float32),
        grid=(G,),
        in_specs=[
            pl.BlockSpec((Cin, L), lambda n: (0, n)),
            const(masks), const(w1), const(b1), const(w3), const(b2),
            const(w2), const(wo), const(bo),
        ],
        out_specs=pl.BlockSpec((Cout, L), lambda n: (0, n)),
        compiler_params=pltpu.CompilerParams(
            dimension_semantics=("parallel",)),
    )(x_cl, masks, w1, b1, w3, b2, w2, wo, bo)

    # back to NCHW to match the PyTorch module.
    return out_cl.reshape(Cout, N, H, W).transpose(1, 0, 2, 3)


# ------------------------- pure-JAX reference -------------------------

def _conv2d(x, w, padding):
    return lax.conv_general_dilated(
        x, w, window_strides=(1, 1), padding=padding,
        dimension_numbers=("NCHW", "OIHW", "NCHW"), precision=_REF_PRECISION)


def _bn(x, gamma, beta, mean, var):
    g = gamma[None, :, None, None]
    b = beta[None, :, None, None]
    m = mean[None, :, None, None]
    v = var[None, :, None, None]
    return (x - m) / jnp.sqrt(v + BN_EPS) * g + b


def reference_forward(x, p):
    h = _conv2d(x, p["w1"], [(0, 0), (0, 0)])
    h = jax.nn.relu(_bn(h, *p["bn1"]))
    h = _conv2d(h, p["w3"], [(1, 1), (1, 1)]) + p["b3"][None, :, None, None]
    h = jax.nn.relu(_bn(h, *p["bn2"]))
    main = _bn(_conv2d(h, p["w2"], [(0, 0), (0, 0)]), *p["bn3"])
    other = _bn(_conv2d(x, p["wo"], [(0, 0), (0, 0)]), *p["bno"])
    return jax.nn.relu(main + other)


# ------------------------- parameter init -------------------------

def init_params(key, Cin, Cout):
    Cint = Cout // 4
    keys = jax.random.split(key, 9)

    def bn_params(k, c):
        k1, k2, k3, k4 = jax.random.split(k, 4)
        gamma = 1.0 + 0.1 * jax.random.normal(k1, (c,), jnp.float32)
        beta = 0.1 * jax.random.normal(k2, (c,), jnp.float32)
        mean = 0.1 * jax.random.normal(k3, (c,), jnp.float32)
        var = jax.random.uniform(k4, (c,), jnp.float32, 0.5, 1.5)
        return (gamma, beta, mean, var)

    return {
        "w1": 0.3 * jax.random.normal(keys[0], (Cint, Cin, 1, 1), jnp.float32),
        "bn1": bn_params(keys[1], Cint),
        "w3": 0.3 * jax.random.normal(keys[2], (Cint, Cint, 3, 3), jnp.float32),
        "b3": 0.1 * jax.random.normal(keys[3], (Cint,), jnp.float32),
        "bn2": bn_params(keys[4], Cint),
        "w2": 0.3 * jax.random.normal(keys[5], (Cout, Cint, 1, 1), jnp.float32),
        "bn3": bn_params(keys[6], Cout),
        "wo": 0.3 * jax.random.normal(keys[7], (Cout, Cin, 1, 1), jnp.float32),
        "bno": bn_params(keys[8], Cout),
    }


if __name__ == "__main__":
    key = jax.random.PRNGKey(0)
    k_x, k_p = jax.random.split(key)

    N, Cin, H, W = 2, 8, 16, 16
    Cout = 16

    x = jax.random.normal(k_x, (N, Cin, H, W), jnp.float32)
    params = init_params(k_p, Cin, Cout)

    out = decoder_forward(x, params)
    out = jax.block_until_ready(out)
    assert out.shape == (N, Cout, H, W)

    ref = reference_forward(x, params)
    # Tolerance sized for default-precision (bf16-pass) MXU matmuls in the
    # kernel vs. a float32 HIGHEST-precision reference, accumulated across
    # three chained conv layers.
    np.testing.assert_allclose(np.asarray(out), np.asarray(ref),
                               atol=5e-2, rtol=2e-2)
    print("KERNEL_OK")
</pallas_src>

<mosaic_0001>
module attributes {stable_mosaic.version = 11 : i64} {
  func.func @kernel(%arg0: i32, %arg1: memref<8x256xf32, #tpu.memory_space<vmem>>, %arg2: memref<9x256xf32, #tpu.memory_space<vmem>>, %arg3: memref<4x8xf32, #tpu.memory_space<vmem>>, %arg4: memref<4x1xf32, #tpu.memory_space<vmem>>, %arg5: memref<36x4xf32, #tpu.memory_space<vmem>>, %arg6: memref<4x1xf32, #tpu.memory_space<vmem>>, %arg7: memref<16x4xf32, #tpu.memory_space<vmem>>, %arg8: memref<16x8xf32, #tpu.memory_space<vmem>>, %arg9: memref<16x1xf32, #tpu.memory_space<vmem>>, %arg10: memref<16x256xf32, #tpu.memory_space<vmem>>) attributes {dimension_semantics = [#tpu.dimension_semantics<parallel>], iteration_bounds = array<i64: 2>, scalar_prefetch = 0 : i64, scratch_operands = 0 : i64, tpu.core_type = #tpu.core_type<tc>, window_params = [{transform_indices = @transform_0, window_bounds = array<i64: 8, 256>}, {pipeline_mode = #tpu.pipeline_mode<synchronous>, transform_indices = @transform_1, window_bounds = array<i64: 9, 256>}, {pipeline_mode = #tpu.pipeline_mode<synchronous>, transform_indices = @transform_2, window_bounds = array<i64: 4, 8>}, {pipeline_mode = #tpu.pipeline_mode<synchronous>, transform_indices = @transform_3, window_bounds = array<i64: 4, 1>}, {pipeline_mode = #tpu.pipeline_mode<synchronous>, transform_indices = @transform_4, window_bounds = array<i64: 36, 4>}, {pipeline_mode = #tpu.pipeline_mode<synchronous>, transform_indices = @transform_5, window_bounds = array<i64: 4, 1>}, {pipeline_mode = #tpu.pipeline_mode<synchronous>, transform_indices = @transform_6, window_bounds = array<i64: 16, 4>}, {pipeline_mode = #tpu.pipeline_mode<synchronous>, transform_indices = @transform_7, window_bounds = array<i64: 16, 8>}, {pipeline_mode = #tpu.pipeline_mode<synchronous>, transform_indices = @transform_8, window_bounds = array<i64: 16, 1>}, {transform_indices = @transform_9, window_bounds = array<i64: 16, 256>}]} {
    %c0 = arith.constant 0 : index
    %c0_0 = arith.constant 0 : index
    %0 = vector.load %arg1[%c0, %c0_0] : memref<8x256xf32, #tpu.memory_space<vmem>>, vector<8x256xf32>
    %c0_1 = arith.constant 0 : index
    %c0_2 = arith.constant 0 : index
    %1 = vector.load %arg3[%c0_1, %c0_2] : memref<4x8xf32, #tpu.memory_space<vmem>>, vector<4x8xf32>
    %cst = arith.constant dense<0.000000e+00> : vector<4x256xf32>
    %2 = tpu.matmul %1, %0, %cst {dimension_numbers = #tpu.dot_dimension_numbers<[1], [0], [0], [1], [0, 0, 1, 1], [], []>} : vector<4x8xf32>, vector<8x256xf32>, vector<4x256xf32> -> vector<4x256xf32>
    %c0_3 = arith.constant 0 : index
    %c0_4 = arith.constant 0 : index
    %3 = vector.load %arg4[%c0_3, %c0_4] : memref<4x1xf32, #tpu.memory_space<vmem>>, vector<4x1xf32>
    %4 = vector.broadcast %3 : vector<4x1xf32> to vector<4x256xf32>
    %5 = arith.addf %2, %4 : vector<4x256xf32>
    %cst_5 = arith.constant 0.000000e+00 : f32
    %6 = vector.broadcast %cst_5 : f32 to vector<4x256xf32>
    %7 = arith.maximumf %5, %6 : vector<4x256xf32>
    %c0_6 = arith.constant 0 : index
    %c0_7 = arith.constant 0 : index
    %8 = vector.load %arg5[%c0_6, %c0_7] : memref<36x4xf32, #tpu.memory_space<vmem>>, vector<36x4xf32>
    %cst_8 = arith.constant dense<0.000000e+00> : vector<36x256xf32>
    %9 = tpu.matmul %8, %7, %cst_8 {dimension_numbers = #tpu.dot_dimension_numbers<[1], [0], [0], [1], [0, 0, 1, 1], [], []>} : vector<36x4xf32>, vector<4x256xf32>, vector<36x256xf32> -> vector<36x256xf32>
    %c0_9 = arith.constant 0 : index
    %c0_10 = arith.constant 0 : index
    %10 = vector.load %arg2[%c0_9, %c0_10] : memref<9x256xf32, #tpu.memory_space<vmem>>, vector<9x256xf32>
    %11 = vector.extract_strided_slice %9 {offsets = [0, 0], sizes = [4, 256], strides = [1, 1]} : vector<36x256xf32> to vector<4x256xf32>
    %c17_i32 = arith.constant 17 : i32
    %12 = tpu.dynamic_rotate %11 by %c17_i32 dim 1 : vector<4x256xf32>, i32 -> vector<4x256xf32>
    %13 = vector.extract_strided_slice %10 {offsets = [0, 0], sizes = [1, 256], strides = [1, 1]} : vector<9x256xf32> to vector<1x256xf32>
    %14 = vector.broadcast %13 : vector<1x256xf32> to vector<4x256xf32>
    %15 = arith.mulf %12, %14 : vector<4x256xf32>
    %16 = vector.extract_strided_slice %9 {offsets = [4, 0], sizes = [4, 256], strides = [1, 1]} : vector<36x256xf32> to vector<4x256xf32>
    %c16_i32 = arith.constant 16 : i32
    %17 = tpu.dynamic_rotate %16 by %c16_i32 dim 1 : vector<4x256xf32>, i32 -> vector<4x256xf32>
    %18 = vector.extract_strided_slice %10 {offsets = [1, 0], sizes = [1, 256], strides = [1, 1]} : vector<9x256xf32> to vector<1x256xf32>
    %19 = vector.broadcast %18 : vector<1x256xf32> to vector<4x256xf32>
    %20 = arith.mulf %17, %19 : vector<4x256xf32>
    %21 = arith.addf %15, %20 : vector<4x256xf32>
    %22 = vector.extract_strided_slice %9 {offsets = [8, 0], sizes = [4, 256], strides = [1, 1]} : vector<36x256xf32> to vector<4x256xf32>
    %c15_i32 = arith.constant 15 : i32
    %23 = tpu.dynamic_rotate %22 by %c15_i32 dim 1 : vector<4x256xf32>, i32 -> vector<4x256xf32>
    %24 = vector.extract_strided_slice %10 {offsets = [2, 0], sizes = [1, 256], strides = [1, 1]} : vector<9x256xf32> to vector<1x256xf32>
    %25 = vector.broadcast %24 : vector<1x256xf32> to vector<4x256xf32>
    %26 = arith.mulf %23, %25 : vector<4x256xf32>
    %27 = arith.addf %21, %26 : vector<4x256xf32>
    %28 = vector.extract_strided_slice %9 {offsets = [12, 0], sizes = [4, 256], strides = [1, 1]} : vector<36x256xf32> to vector<4x256xf32>
    %c1_i32 = arith.constant 1 : i32
    %29 = tpu.dynamic_rotate %28 by %c1_i32 dim 1 : vector<4x256xf32>, i32 -> vector<4x256xf32>
    %30 = vector.extract_strided_slice %10 {offsets = [3, 0], sizes = [1, 256], strides = [1, 1]} : vector<9x256xf32> to vector<1x256xf32>
    %31 = vector.broadcast %30 : vector<1x256xf32> to vector<4x256xf32>
    %32 = arith.mulf %29, %31 : vector<4x256xf32>
    %33 = arith.addf %27, %32 : vector<4x256xf32>
    %34 = vector.extract_strided_slice %9 {offsets = [16, 0], sizes = [4, 256], strides = [1, 1]} : vector<36x256xf32> to vector<4x256xf32>
    %35 = arith.addf %33, %34 : vector<4x256xf32>
    %36 = vector.extract_strided_slice %9 {offsets = [20, 0], sizes = [4, 256], strides = [1, 1]} : vector<36x256xf32> to vector<4x256xf32>
    %c255_i32 = arith.constant 255 : i32
    %37 = tpu.dynamic_rotate %36 by %c255_i32 dim 1 : vector<4x256xf32>, i32 -> vector<4x256xf32>
    %38 = vector.extract_strided_slice %10 {offsets = [5, 0], sizes = [1, 256], strides = [1, 1]} : vector<9x256xf32> to vector<1x256xf32>
    %39 = vector.broadcast %38 : vector<1x256xf32> to vector<4x256xf32>
    %40 = arith.mulf %37, %39 : vector<4x256xf32>
    %41 = arith.addf %35, %40 : vector<4x256xf32>
    %42 = vector.extract_strided_slice %9 {offsets = [24, 0], sizes = [4, 256], strides = [1, 1]} : vector<36x256xf32> to vector<4x256xf32>
    %c241_i32 = arith.constant 241 : i32
    %43 = tpu.dynamic_rotate %42 by %c241_i32 dim 1 : vector<4x256xf32>, i32 -> vector<4x256xf32>
    %44 = vector.extract_strided_slice %10 {offsets = [6, 0], sizes = [1, 256], strides = [1, 1]} : vector<9x256xf32> to vector<1x256xf32>
    %45 = vector.broadcast %44 : vector<1x256xf32> to vector<4x256xf32>
    %46 = arith.mulf %43, %45 : vector<4x256xf32>
    %47 = arith.addf %41, %46 : vector<4x256xf32>
    %48 = vector.extract_strided_slice %9 {offsets = [28, 0], sizes = [4, 256], strides = [1, 1]} : vector<36x256xf32> to vector<4x256xf32>
    %c240_i32 = arith.constant 240 : i32
    %49 = tpu.dynamic_rotate %48 by %c240_i32 dim 1 : vector<4x256xf32>, i32 -> vector<4x256xf32>
    %50 = vector.extract_strided_slice %10 {offsets = [7, 0], sizes = [1, 256], strides = [1, 1]} : vector<9x256xf32> to vector<1x256xf32>
    %51 = vector.broadcast %50 : vector<1x256xf32> to vector<4x256xf32>
    %52 = arith.mulf %49, %51 : vector<4x256xf32>
    %53 = arith.addf %47, %52 : vector<4x256xf32>
    %54 = vector.extract_strided_slice %9 {offsets = [32, 0], sizes = [4, 256], strides = [1, 1]} : vector<36x256xf32> to vector<4x256xf32>
    %c239_i32 = arith.constant 239 : i32
    %55 = tpu.dynamic_rotate %54 by %c239_i32 dim 1 : vector<4x256xf32>, i32 -> vector<4x256xf32>
    %56 = vector.extract_strided_slice %10 {offsets = [8, 0], sizes = [1, 256], strides = [1, 1]} : vector<9x256xf32> to vector<1x256xf32>
    %57 = vector.broadcast %56 : vector<1x256xf32> to vector<4x256xf32>
    %58 = arith.mulf %55, %57 : vector<4x256xf32>
    %59 = arith.addf %53, %58 : vector<4x256xf32>
    %c0_11 = arith.constant 0 : index
    %c0_12 = arith.constant 0 : index
    %60 = vector.load %arg6[%c0_11, %c0_12] : memref<4x1xf32, #tpu.memory_space<vmem>>, vector<4x1xf32>
    %61 = vector.broadcast %60 : vector<4x1xf32> to vector<4x256xf32>
    %62 = arith.addf %59, %61 : vector<4x256xf32>
    %cst_13 = arith.constant 0.000000e+00 : f32
    %63 = vector.broadcast %cst_13 : f32 to vector<4x256xf32>
    %64 = arith.maximumf %62, %63 : vector<4x256xf32>
    %c0_14 = arith.constant 0 : index
    %c0_15 = arith.constant 0 : index
    %65 = vector.load %arg7[%c0_14, %c0_15] : memref<16x4xf32, #tpu.memory_space<vmem>>, vector<16x4xf32>
    %cst_16 = arith.constant dense<0.000000e+00> : vector<16x256xf32>
    %66 = tpu.matmul %65, %64, %cst_16 {dimension_numbers = #tpu.dot_dimension_numbers<[1], [0], [0], [1], [0, 0, 1, 1], [], []>} : vector<16x4xf32>, vector<4x256xf32>, vector<16x256xf32> -> vector<16x256xf32>
    %c0_17 = arith.constant 0 : index
    %c0_18 = arith.constant 0 : index
    %67 = vector.load %arg8[%c0_17, %c0_18] : memref<16x8xf32, #tpu.memory_space<vmem>>, vector<16x8xf32>
    %cst_19 = arith.constant dense<0.000000e+00> : vector<16x256xf32>
    %68 = tpu.matmul %67, %0, %cst_19 {dimension_numbers = #tpu.dot_dimension_numbers<[1], [0], [0], [1], [0, 0, 1, 1], [], []>} : vector<16x8xf32>, vector<8x256xf32>, vector<16x256xf32> -> vector<16x256xf32>
    %69 = arith.addf %66, %68 : vector<16x256xf32>
    %c0_20 = arith.constant 0 : index
    %c0_21 = arith.constant 0 : index
    %70 = vector.load %arg9[%c0_20, %c0_21] : memref<16x1xf32, #tpu.memory_space<vmem>>, vector<16x1xf32>
    %71 = vector.broadcast %70 : vector<16x1xf32> to vector<16x256xf32>
    %72 = arith.addf %69, %71 : vector<16x256xf32>
    %cst_22 = arith.constant 0.000000e+00 : f32
    %73 = vector.broadcast %cst_22 : f32 to vector<16x256xf32>
    %74 = arith.maximumf %72, %73 : vector<16x256xf32>
    %c0_23 = arith.constant 0 : index
    %c0_24 = arith.constant 0 : index
    %75 = vector.load %arg10[%c0_23, %c0_24] : memref<16x256xf32, #tpu.memory_space<vmem>>, vector<16x256xf32>
    tpu.vector_store %arg10[%c0_23, %c0_24], %74 {strides = array<i32>} : memref<16x256xf32, #tpu.memory_space<vmem>>, vector<16x256xf32>,
    return
  }
  func.func @transform_0(%arg0: i32) -> (i32, i32) {
    %c0_i32 = arith.constant 0 : i32
    %c0_i32_0 = arith.constant 0 : i32
    return %c0_i32, %arg0 : i32, i32
  }
  func.func @transform_1(%arg0: i32) -> (i32, i32) {
    %c0_i32 = arith.constant 0 : i32
    %c0_i32_0 = arith.constant 0 : i32
    %c0_i32_1 = arith.constant 0 : i32
    return %c0_i32, %c0_i32_0 : i32, i32
  }
  func.func @transform_2(%arg0: i32) -> (i32, i32) {
    %c0_i32 = arith.constant 0 : i32
    %c0_i32_0 = arith.constant 0 : i32
    %c0_i32_1 = arith.constant 0 : i32
    return %c0_i32, %c0_i32_0 : i32, i32
  }
  func.func @transform_3(%arg0: i32) -> (i32, i32) {
    %c0_i32 = arith.constant 0 : i32
    %c0_i32_0 = arith.constant 0 : i32
    %c0_i32_1 = arith.constant 0 : i32
    return %c0_i32, %c0_i32_0 : i32, i32
  }
  func.func @transform_4(%arg0: i32) -> (i32, i32) {
    %c0_i32 = arith.constant 0 : i32
    %c0_i32_0 = arith.constant 0 : i32
    %c0_i32_1 = arith.constant 0 : i32
    return %c0_i32, %c0_i32_0 : i32, i32
  }
  func.func @transform_5(%arg0: i32) -> (i32, i32) {
    %c0_i32 = arith.constant 0 : i32
    %c0_i32_0 = arith.constant 0 : i32
    %c0_i32_1 = arith.constant 0 : i32
    return %c0_i32, %c0_i32_0 : i32, i32
  }
  func.func @transform_6(%arg0: i32) -> (i32, i32) {
    %c0_i32 = arith.constant 0 : i32
    %c0_i32_0 = arith.constant 0 : i32
    %c0_i32_1 = arith.constant 0 : i32
    return %c0_i32, %c0_i32_0 : i32, i32
  }
  func.func @transform_7(%arg0: i32) -> (i32, i32) {
    %c0_i32 = arith.constant 0 : i32
    %c0_i32_0 = arith.constant 0 : i32
    %c0_i32_1 = arith.constant 0 : i32
    return %c0_i32, %c0_i32_0 : i32, i32
  }
  func.func @transform_8(%arg0: i32) -> (i32, i32) {
    %c0_i32 = arith.constant 0 : i32
    %c0_i32_0 = arith.constant 0 : i32
    %c0_i32_1 = arith.constant 0 : i32
    return %c0_i32, %c0_i32_0 : i32, i32
  }
  func.func @transform_9(%arg0: i32) -> (i32, i32) {
    %c0_i32 = arith.constant 0 : i32
    %c0_i32_0 = arith.constant 0 : i32
    return %c0_i32, %arg0 : i32, i32
  }
}

</mosaic_0001>

<llo_original>
// kernel: tpu_custom_call.1
$region0: #{tpu_custom_call.1}
  #allocation0 [shape = 'u32[]', space=smem, size = 0x4, offset = 0x4, fixed_abs, tag = 'smem constant byte address 0x4 - core index']
  #allocation1 [shape = 'u32[72,128]{1,0:T(1,128)}', space=vmem, size = 0x9000, scoped, tag = 'internal scratch']
  %s0 = inlined_call_operand.vmem [shape: f32[8,512], index: 0, kind: input, shape index: {}]
  %s1 = inlined_call_operand.vmem [shape: f32[9,256], index: 1, kind: input, shape index: {}]
  %s2 = inlined_call_operand.vmem [shape: f32[4,8], index: 2, kind: input, shape index: {}]
  %s3 = inlined_call_operand.vmem [shape: f32[4,1], index: 3, kind: input, shape index: {}]
  %s4 = inlined_call_operand.vmem [shape: f32[36,4], index: 4, kind: input, shape index: {}]
  %s5 = inlined_call_operand.vmem [shape: f32[4,1], index: 5, kind: input, shape index: {}]
  %s6 = inlined_call_operand.vmem [shape: f32[16,4], index: 6, kind: input, shape index: {}]
  %s7 = inlined_call_operand.vmem [shape: f32[16,8], index: 7, kind: input, shape index: {}]
  %s8 = inlined_call_operand.vmem [shape: f32[16,1], index: 8, kind: input, shape index: {}]
  %s9 = inlined_call_operand.hbm [shape: f32[16,512], index: 9, kind: output, shape index: {}]
  %s10 = sld [smem:[#allocation0]]
  $region69: #{tpu_custom_call.1} parent=0
    _
  %s12 = ssub.s32 1, %s10
  %s13 = scalar_select 0, %s12, %s10
  $region1: #{tpu_custom_call.1} parent=0
    #allocation2 [shape = 'u8[32768]{0}', space=vmem, size = 0x8000, scoped, tag = 'output window, operand 0']
    #allocation3 [shape = 's32[2]{0}', space=sflag, size = 0x8, scoped, tag = 'scoped memory for tpu_custom_call.1']
    %14 = vsyncpa [#allocation3], 0
    %s15 = scalar_lea.sflag [#allocation3], 1
    %16 = vsyncpa %s15, 0
    loop: start=0, step=1, limit=4
    $region2: #{tpu_custom_call.1} parent=1 // loop_pre_header
      _
    $region3: #{tpu_custom_call.1} parent=1 // loop_header
      %s18 = sphi 0, %s22
      %p19 = scmp.ge.s32.totalorder %s18, 4
      %s28 = sphi 0, %s30
      %s31 = sphi 0, %s28
      %s32 = sphi 0, %s31
      %s48 = sphi 0, %s32
      %s52 = sphi 0, %s52
      %s54 = sphi 0, %s52
      %s55 = sphi 0, %s54
      %s69 = sphi 0, %s55
      %s73 = sphi 0, %s73
      %s75 = sphi 0, %s73
      %s76 = sphi 0, %s75
      %s90 = sphi 0, %s76
      %s94 = sphi 0, %s94
      %s96 = sphi 0, %s94
      %s97 = sphi 0, %s96
      %s111 = sphi 0, %s97
      %s115 = sphi 0, %s115
      %s117 = sphi 0, %s115
      %s118 = sphi 0, %s117
      %s132 = sphi 0, %s118
      %s136 = sphi 0, %s136
      %s138 = sphi 0, %s136
      %s139 = sphi 0, %s138
      %s153 = sphi 0, %s139
      %s157 = sphi 0, %s157
      %s159 = sphi 0, %s157
      %s160 = sphi 0, %s159
      %s174 = sphi 0, %s160
      %s178 = sphi 0, %s178
      %s180 = sphi 0, %s178
      %s181 = sphi 0, %s180
      %s195 = sphi 0, %s181
      %s199 = sphi 0, %s199
      %s201 = sphi 0, %s199
      %s202 = sphi 0, %s201
      %s216 = sphi 0, %s202
      %s222 = sphi 0, %s224
      %s225 = sphi 0, %s222
      %s226 = sphi 0, %s225
      %s242 = sphi 0, %s226
    $region4: #{tpu_custom_call.1} parent=1 // loop_header_branch
      %21 = sbr.rel (%p19) target = $region8
    $region5: #{tpu_custom_call.1} parent=1 // loop_body
      %s23 = ssub.s32 %s18, 1
      %s24 = ssub.s32 %s18, 2
      %s25 = sadd.s32 %s18, 1
      %s26 = ssub.s32 %s18, %s25
      %p27 = scmp.eq.s32.totalorder %s26, 0
      %s29 = sadd.s32 %s28, 1
      %s30 = scalar_select %p27, %s28, %s29
      %p33 = pneg %p27
      %p34 = scmp.eq.s32.totalorder %s18, 1
      %p35 = por %p33, %p34
      %p36 = scmp.ne.s32.totalorder %s28, %s31
      %p37 = scmp.eq.s32.totalorder %s18, 0
      %p38 = por %p36, %p37
      %p39 = scmp.ne.s32.totalorder %s28, %s31
      %p40 = scmp.eq.s32.totalorder %s23, 1
      %p41 = por %p39, %p40
      %p42 = scmp.ne.s32.totalorder %s31, %s32
      %p43 = scmp.eq.s32.totalorder %s23, 0
      %p44 = por %p42, %p43
      %p45 = scmp.ne.s32.totalorder %s31, %s32
      %p46 = scmp.eq.s32.totalorder %s24, 1
      %p47 = por %p45, %p46
      %p49 = scmp.ne.s32.totalorder %s32, %s48
      %p50 = scmp.eq.s32.totalorder %s24, 0
      %p51 = por %p49, %p50
      %s53 = sadd.s32 %s52, 1
      %p56 = scmp.eq.s32.totalorder %s18, 1
      %p57 = scmp.ne.s32.totalorder %s52, %s54
      %p58 = scmp.eq.s32.totalorder %s18, 0
      %p59 = por %p57, %p58
      %p60 = scmp.ne.s32.totalorder %s52, %s54
      %p61 = scmp.eq.s32.totalorder %s23, 1
      %p62 = por %p60, %p61
      %p63 = scmp.ne.s32.totalorder %s54, %s55
      %p64 = scmp.eq.s32.totalorder %s23, 0
      %p65 = por %p63, %p64
      %p66 = scmp.ne.s32.totalorder %s54, %s55
      %p67 = scmp.eq.s32.totalorder %s24, 1
      %p68 = por %p66, %p67
      %p70 = scmp.ne.s32.totalorder %s55, %s69
      %p71 = scmp.eq.s32.totalorder %s24, 0
      %p72 = por %p70, %p71
      %s74 = sadd.s32 %s73, 1
      %p77 = scmp.eq.s32.totalorder %s18, 1
      %p78 = scmp.ne.s32.totalorder %s73, %s75
      %p79 = scmp.eq.s32.totalorder %s18, 0
      %p80 = por %p78, %p79
      %p81 = scmp.ne.s32.totalorder %s73, %s75
      %p82 = scmp.eq.s32.totalorder %s23, 1
      %p83 = por %p81, %p82
      %p84 = scmp.ne.s32.totalorder %s75, %s76
      %p85 = scmp.eq.s32.totalorder %s23, 0
      %p86 = por %p84, %p85
      %p87 = scmp.ne.s32.totalorder %s75, %s76
      %p88 = scmp.eq.s32.totalorder %s24, 1
      %p89 = por %p87, %p88
      %p91 = scmp.ne.s32.totalorder %s76, %s90
      %p92 = scmp.eq.s32.totalorder %s24, 0
      %p93 = por %p91, %p92
      %s95 = sadd.s32 %s94, 1
      %p98 = scmp.eq.s32.totalorder %s18, 1
      %p99 = scmp.ne.s32.totalorder %s94, %s96
      %p100 = scmp.eq.s32.totalorder %s18, 0
      %p101 = por %p99, %p100
      %p102 = scmp.ne.s32.totalorder %s94, %s96
      %p103 = scmp.eq.s32.totalorder %s23, 1
      %p104 = por %p102, %p103
      %p105 = scmp.ne.s32.totalorder %s96, %s97
      %p106 = scmp.eq.s32.totalorder %s23, 0
      %p107 = por %p105, %p106
      %p108 = scmp.ne.s32.totalorder %s96, %s97
      %p109 = scmp.eq.s32.totalorder %s24, 1
      %p110 = por %p108, %p109
      %p112 = scmp.ne.s32.totalorder %s97, %s111
      %p113 = scmp.eq.s32.totalorder %s24, 0
      %p114 = por %p112, %p113
      %s116 = sadd.s32 %s115, 1
      %p119 = scmp.eq.s32.totalorder %s18, 1
      %p120 = scmp.ne.s32.totalorder %s115, %s117
      %p121 = scmp.eq.s32.totalorder %s18, 0
      %p122 = por %p120, %p121
      %p123 = scmp.ne.s32.totalorder %s115, %s117
      %p124 = scmp.eq.s32.totalorder %s23, 1
      %p125 = por %p123, %p124
      %p126 = scmp.ne.s32.totalorder %s117, %s118
      %p127 = scmp.eq.s32.totalorder %s23, 0
      %p128 = por %p126, %p127
      %p129 = scmp.ne.s32.totalorder %s117, %s118
      %p130 = scmp.eq.s32.totalorder %s24, 1
      %p131 = por %p129, %p130
      %p133 = scmp.ne.s32.totalorder %s118, %s132
      %p134 = scmp.eq.s32.totalorder %s24, 0
      %p135 = por %p133, %p134
      %s137 = sadd.s32 %s136, 1
      %p140 = scmp.eq.s32.totalorder %s18, 1
      %p141 = scmp.ne.s32.totalorder %s136, %s138
      %p142 = scmp.eq.s32.totalorder %s18, 0
      %p143 = por %p141, %p142
      %p144 = scmp.ne.s32.totalorder %s136, %s138
      %p145 = scmp.eq.s32.totalorder %s23, 1
      %p146 = por %p144, %p145
      %p147 = scmp.ne.s32.totalorder %s138, %s139
      %p148 = scmp.eq.s32.totalorder %s23, 0
      %p149 = por %p147, %p148
      %p150 = scmp.ne.s32.totalorder %s138, %s139
      %p151 = scmp.eq.s32.totalorder %s24, 1
      %p152 = por %p150, %p151
      %p154 = scmp.ne.s32.totalorder %s139, %s153
      %p155 = scmp.eq.s32.totalorder %s24, 0
      %p156 = por %p154, %p155
      %s158 = sadd.s32 %s157, 1
      %p161 = scmp.eq.s32.totalorder %s18, 1
      %p162 = scmp.ne.s32.totalorder %s157, %s159
      %p163 = scmp.eq.s32.totalorder %s18, 0
      %p164 = por %p162, %p163
      %p165 = scmp.ne.s32.totalorder %s157, %s159
      %p166 = scmp.eq.s32.totalorder %s23, 1
      %p167 = por %p165, %p166
      %p168 = scmp.ne.s32.totalorder %s159, %s160
      %p169 = scmp.eq.s32.totalorder %s23, 0
      %p170 = por %p168, %p169
      %p171 = scmp.ne.s32.totalorder %s159, %s160
      %p172 = scmp.eq.s32.totalorder %s24, 1
      %p173 = por %p171, %p172
      %p175 = scmp.ne.s32.totalorder %s160, %s174
      %p176 = scmp.eq.s32.totalorder %s24, 0
      %p177 = por %p175, %p176
      %s179 = sadd.s32 %s178, 1
      %p182 = scmp.eq.s32.totalorder %s18, 1
      %p183 = scmp.ne.s32.totalorder %s178, %s180
      %p184 = scmp.eq.s32.totalorder %s18, 0
      %p185 = por %p183, %p184
      %p186 = scmp.ne.s32.totalorder %s178, %s180
      %p187 = scmp.eq.s32.totalorder %s23, 1
      %p188 = por %p186, %p187
      %p189 = scmp.ne.s32.totalorder %s180, %s181
      %p190 = scmp.eq.s32.totalorder %s23, 0
      %p191 = por %p189, %p190
      %p192 = scmp.ne.s32.totalorder %s180, %s181
      %p193 = scmp.eq.s32.totalorder %s24, 1
      %p194 = por %p192, %p193
      %p196 = scmp.ne.s32.totalorder %s181, %s195
      %p197 = scmp.eq.s32.totalorder %s24, 0
      %p198 = por %p196, %p197
      %s200 = sadd.s32 %s199, 1
      %p203 = scmp.eq.s32.totalorder %s18, 1
      %p204 = scmp.ne.s32.totalorder %s199, %s201
      %p205 = scmp.eq.s32.totalorder %s18, 0
      %p206 = por %p204, %p205
      %p207 = scmp.ne.s32.totalorder %s199, %s201
      %p208 = scmp.eq.s32.totalorder %s23, 1
      %p209 = por %p207, %p208
      %p210 = scmp.ne.s32.totalorder %s201, %s202
      %p211 = scmp.eq.s32.totalorder %s23, 0
      %p212 = por %p210, %p211
      %p213 = scmp.ne.s32.totalorder %s201, %s202
      %p214 = scmp.eq.s32.totalorder %s24, 1
      %p215 = por %p213, %p214
      %p217 = scmp.ne.s32.totalorder %s202, %s216
      %p218 = scmp.eq.s32.totalorder %s24, 0
      %p219 = por %p217, %p218
      %s220 = ssub.s32 %s18, %s25
      %p221 = scmp.eq.s32.totalorder %s220, 0
      %s223 = sadd.s32 %s222, 1
      %s224 = scalar_select %p221, %s222, %s223
      %p227 = pneg %p221
      %p228 = scmp.eq.s32.totalorder %s18, 1
      %p229 = por %p227, %p228
      %p230 = scmp.ne.s32.totalorder %s222, %s225
      %p231 = scmp.eq.s32.totalorder %s18, 0
      %p232 = por %p230, %p231
      %p233 = scmp.ne.s32.totalorder %s222, %s225
      %p234 = scmp.eq.s32.totalorder %s23, 1
      %p235 = por %p233, %p234
      %p236 = scmp.ne.s32.totalorder %s225, %s226
      %p237 = scmp.eq.s32.totalorder %s23, 0
      %p238 = por %p236, %p237
      %p239 = scmp.ne.s32.totalorder %s225, %s226
      %p240 = scmp.eq.s32.totalorder %s24, 1
      %p241 = por %p239, %p240
      %p243 = scmp.ne.s32.totalorder %s226, %s242
      %p244 = scmp.eq.s32.totalorder %s24, 0
      %p245 = por %p243, %p244
      %p246 = scmp.le.s32.totalorder 1, %s18
      %p247 = scmp.lt.s32.totalorder %s18, 3
      %p248 = pnand %p246, %p247
      %p249 = pneg %p248
      // Predicated region
      $region9: #{tpu_custom_call.1} parent=5 // pred_check
        _
      $region10: #{tpu_custom_call.1} parent=5 // pred_check_branch
        %251 = sbr.rel (%p248) target = $region12
      $region11: #{tpu_custom_call.1} parent=5 // pred_region
        %s252 = ssub.s32 %s18, 1
        // Predicated region
        $region13: #{tpu_custom_call.1} parent=11 // pred_check
          %p253 = pneg %p65
        $region14: #{tpu_custom_call.1} parent=11 // pred_check_branch
          %255 = sbr.rel (%p253) target = $region16
        $region15: #{tpu_custom_call.1} parent=11 // pred_region
          _
        $region16: #{tpu_custom_call.1} parent=11 // pred_fallthru
          _
        // Predicated region
        $region17: #{tpu_custom_call.1} parent=11 // pred_check
          %p256 = pneg %p86
        $region18: #{tpu_custom_call.1} parent=11 // pred_check_branch
          %258 = sbr.rel (%p256) target = $region20
        $region19: #{tpu_custom_call.1} parent=11 // pred_region
          _
        $region20: #{tpu_custom_call.1} parent=11 // pred_fallthru
          _
        // Predicated region
        $region21: #{tpu_custom_call.1} parent=11 // pred_check
          %p259 = pneg %p107
        $region22: #{tpu_custom_call.1} parent=11 // pred_check_branch
          %261 = sbr.rel (%p259) target = $region24
        $region23: #{tpu_custom_call.1} parent=11 // pred_region
          _
        $region24: #{tpu_custom_call.1} parent=11 // pred_fallthru
          _
        // Predicated region
        $region25: #{tpu_custom_call.1} parent=11 // pred_check
          %p262 = pneg %p128
        $region26: #{tpu_custom_call.1} parent=11 // pred_check_branch
          %264 = sbr.rel (%p262) target = $region28
        $region27: #{tpu_custom_call.1} parent=11 // pred_region
          _
        $region28: #{tpu_custom_call.1} parent=11 // pred_fallthru
          _
        // Predicated region
        $region29: #{tpu_custom_call.1} parent=11 // pred_check
          %p265 = pneg %p149
        $region30: #{tpu_custom_call.1} parent=11 // pred_check_branch
          %267 = sbr.rel (%p265) target = $region32
        $region31: #{tpu_custom_call.1} parent=11 // pred_region
          _
        $region32: #{tpu_custom_call.1} parent=11 // pred_fallthru
          _
        // Predicated region
        $region33: #{tpu_custom_call.1} parent=11 // pred_check
          %p268 = pneg %p170
        $region34: #{tpu_custom_call.1} parent=11 // pred_check_branch
          %270 = sbr.rel (%p268) target = $region36
        $region35: #{tpu_custom_call.1} parent=11 // pred_region
          _
        $region36: #{tpu_custom_call.1} parent=11 // pred_fallthru
          _
        // Predicated region
        $region37: #{tpu_custom_call.1} parent=11 // pred_check
          %p271 = pneg %p191
        $region38: #{tpu_custom_call.1} parent=11 // pred_check_branch
          %273 = sbr.rel (%p271) target = $region40
        $region39: #{tpu_custom_call.1} parent=11 // pred_region
          _
        $region40: #{tpu_custom_call.1} parent=11 // pred_fallthru
          _
        // Predicated region
        $region41: #{tpu_custom_call.1} parent=11 // pred_check
          %p274 = pneg %p212
        $region42: #{tpu_custom_call.1} parent=11 // pred_check_branch
          %276 = sbr.rel (%p274) target = $region44
        $region43: #{tpu_custom_call.1} parent=11 // pred_region
          _
        $region44: #{tpu_custom_call.1} parent=11 // pred_fallthru
          _
      $region12: #{tpu_custom_call.1} parent=5 // pred_fallthru
        _
      %p277 = scmp.lt.s32.totalorder %s18, 2
      // Predicated region
      $region45: #{tpu_custom_call.1} parent=5 // pred_check
        %p278 = pneg %p277
      $region46: #{tpu_custom_call.1} parent=5 // pred_check_branch
        %280 = sbr.rel (%p278) target = $region48
      $region47: #{tpu_custom_call.1} parent=5 // pred_region
        // Predicated region
        $region49: #{tpu_custom_call.1} parent=47 // pred_check
          %p281 = pneg %p38
        $region50: #{tpu_custom_call.1} parent=47 // pred_check_branch
          %283 = sbr.rel (%p281) target = $region52
        $region51: #{tpu_custom_call.1} parent=47 // pred_region
          %s284 = smul.u32 2, %s18
          %p285 = scmp.lt.s32.totalorder %s284, 3
          %s286 = scalar_select %p285, %s284, 3
          %s287 = smul.addr %s286, 8
          %s288 = scalar_lea.vmem %s0, %s287
          %s289 = smul.u32 2, %s18
        $region52: #{tpu_custom_call.1} parent=47 // pred_fallthru
          _
      $region48: #{tpu_custom_call.1} parent=5 // pred_fallthru
        _
      %p290 = scmp.le.s32.totalorder 1, %s18
      %p291 = scmp.lt.s32.totalorder %s18, 3
      %p292 = pnand %p290, %p291
      %p293 = pneg %p292
      // Predicated region
      $region53: #{tpu_custom_call.1} parent=5 // pred_check
        _
      $region54: #{tpu_custom_call.1} parent=5 // pred_check_branch
        %295 = sbr.rel (%p292) target = $region56
      $region55: #{tpu_custom_call.1} parent=5 // pred_region
        %s296 = ssub.s32 %s18, 1
        %s297 = smul.u32 2, %s23
        %p298 = scmp.lt.s32.totalorder %s297, 3
        %s299 = scalar_select %p298, %s297, 3
        %s300 = smul.addr %s299, 8
        %s301 = scalar_lea.vmem %s0, %s300
        %p302 = pneg %p44
        %p303 = pneg %p41
        %p304 = pneg %p65
        %p305 = pneg %p62
        %p306 = pneg %p86
        %p307 = pneg %p83
        %p308 = pneg %p107
        %p309 = pneg %p104
        %p310 = pneg %p128
        %p311 = pneg %p125
        %p312 = pneg %p149
        %p313 = pneg %p146
        %p314 = pneg %p170
        %p315 = pneg %p167
        %p316 = pneg %p191
        %p317 = pneg %p188
        %p318 = pneg %p212
        %p319 = pneg %p209
        %p320 = pneg %p238
        %p321 = pneg %p235
        %s322 = sand.u32 %s225, 1
        %s323 = scalar_lea.sflag [#allocation3], %s322
        %s324 = sand.u32 %s225, 1
        %s325 = smul.addr %s324, 32
        %s326 = scalar_lea.vmem [#allocation2], %s325
        %s327 = smul.u32 2, %s23
        %p328 = scmp.lt.s32.totalorder %s327, 3
        %s329 = scalar_select %p328, %s327, 3
        %s330 = smul.addr %s329, 8
        %s331 = scalar_lea.vmem %s0, %s330
        %s332 = smul.u32 2, %s23
        %s333 = smul.u32 2, %s23
        %v334 = vld [vmem:[%s331] sm:$0xff]
        %v335 = vld [vmem:[%s331 + $0x8] sm:$0xff]
        %v336 = vld [vmem:[%s2] sm:$0xf]
        %v337 = vld [vmem:[%s3] sm:$0xf]
        %339 = vset.pattern.permute.xlu0 0
        %340 = vperm.xlu0 %339, %v337
        %v341 = vpop.permute.xlu0 %340
        %vm343 = vcmask 64512
        %v345 = vsel %vm343, %v336, 0
        %347 = vmatpush.msra.mxu0 0.0
        %348 = vmatpush.msra.mxu0 0.0
        %349 = vmatpush.msra.mxu0 0.0
        %350 = vmatpush.msra.mxu0 0.0
        %351 = vmatpush.msra.mxu0 0.0
        %352 = vmatpush.msra.mxu0 0.0
        %353 = vmatpush.msra.mxu0 0.0
        %354 = vmatpush.msra.mxu0 0.0
        %355 = vmatpush.msra.mxu0 0.0
        %356 = vmatpush.msra.mxu0 0.0
        %357 = vmatpush.msra.mxu0 0.0
        %358 = vmatpush.msra.mxu0 0.0
        %359 = vmatpush.msra.mxu0 0.0
        %360 = vmatpush.msra.mxu0 0.0
        %361 = vmatpush.msra.mxu0 0.0
        %362 = vmatpush.msra.mxu0 %v334
        %363 = vmatmul.f32.gmra.mxu0 %v345
        %v364 = vpop.f32.mrf.mxu0
        %v365 = vadd.f32 %v341, %v364
        %366 = vdwg.mxu0
        %367 = vmatpush.msra.mxu0 0.0
        %368 = vmatpush.msra.mxu0 0.0
        %369 = vmatpush.msra.mxu0 0.0
        %370 = vmatpush.msra.mxu0 0.0
        %371 = vmatpush.msra.mxu0 0.0
        %372 = vmatpush.msra.mxu0 0.0
        %373 = vmatpush.msra.mxu0 0.0
        %374 = vmatpush.msra.mxu0 0.0
        %375 = vmatpush.msra.mxu0 0.0
        %376 = vmatpush.msra.mxu0 0.0
        %377 = vmatpush.msra.mxu0 0.0
        %378 = vmatpush.msra.mxu0 0.0
        %379 = vmatpush.msra.mxu0 0.0
        %380 = vmatpush.msra.mxu0 0.0
        %381 = vmatpush.msra.mxu0 0.0
        %382 = vmatpush.msra.mxu0 %v335
        %383 = vmatmul.f32.gmra.mxu0 %v345
        %v384 = vpop.f32.mrf.mxu0
        %v385 = vadd.f32 %v341, %v384
        %386 = vdwg.mxu0
        %v387 = vmax.f32 %v365, 0.0
        %v388 = vmax.f32 %v385, 0.0
        %v389 = vld [vmem:[%s4] sm:$0xff]
        %v390 = vld [vmem:[%s4 + $0x8] sm:$0xff]
        %v391 = vld [vmem:[%s4 + $0x10] sm:$0xff]
        %v392 = vld [vmem:[%s4 + $0x18] sm:$0xff]
        %v393 = vld [vmem:[%s4 + $0x20] sm:$0xf]
        %vm394 = vcmask 31744
        %v396 = vsel %vm394, %v389, 0
        %v399 = vsel %vm394, %v390, 0
        %v402 = vsel %vm394, %v391, 0
        %v405 = vsel %vm394, %v392, 0
        %v408 = vsel %vm394, %v393, 0
        %vm410 = vcmask 1043456
        %v412 = vsel %vm410, %v387, 0
        %v415 = vsel %vm410, %v388, 0
        %417 = vmatpush.msra.mxu0 0.0
        %418 = vmatpush.msra.mxu0 0.0
        %419 = vmatpush.msra.mxu0 0.0
        %420 = vmatpush.msra.mxu0 0.0
        %421 = vmatpush.msra.mxu0 0.0
        %422 = vmatpush.msra.mxu0 0.0
        %423 = vmatpush.msra.mxu0 0.0
        %424 = vmatpush.msra.mxu0 0.0
        %425 = vmatpush.msra.mxu0 0.0
        %426 = vmatpush.msra.mxu0 0.0
        %427 = vmatpush.msra.mxu0 0.0
        %428 = vmatpush.msra.mxu0 0.0
        %429 = vmatpush.msra.mxu0 0.0
        %430 = vmatpush.msra.mxu0 0.0
        %431 = vmatpush.msra.mxu0 0.0
        %432 = vmatpush.msra.mxu0 %v412
        %433 = vmatmul.f32.gmra.mxu0 %v396
        %v434 = vpop.f32.mrf.mxu0
        %v435 = vadd.f32 0.0, %v434
        %436 = vmatmul.f32.gmra.mxu0 %v399
        %v437 = vpop.f32.mrf.mxu0
        %v438 = vadd.f32 0.0, %v437
        %439 = vmatmul.f32.gmra.mxu0 %v402
        %v440 = vpop.f32.mrf.mxu0
        %v441 = vadd.f32 0.0, %v440
        %442 = vmatmul.f32.gmra.mxu0 %v405
        %v443 = vpop.f32.mrf.mxu0
        %v444 = vadd.f32 0.0, %v443
        %445 = vmatmul.f32.gmra.mxu0 %v408
        %v446 = vpop.f32.mrf.mxu0
        %v447 = vadd.f32 0.0, %v446
        %448 = vdwg.mxu0
        %449 = vmatpush.msra.mxu0 0.0
        %450 = vmatpush.msra.mxu0 0.0
        %451 = vmatpush.msra.mxu0 0.0
        %452 = vmatpush.msra.mxu0 0.0
        %453 = vmatpush.msra.mxu0 0.0
        %454 = vmatpush.msra.mxu0 0.0
        %455 = vmatpush.msra.mxu0 0.0
        %456 = vmatpush.msra.mxu0 0.0
        %457 = vmatpush.msra.mxu0 0.0
        %458 = vmatpush.msra.mxu0 0.0
        %459 = vmatpush.msra.mxu0 0.0
        %460 = vmatpush.msra.mxu0 0.0
        %461 = vmatpush.msra.mxu0 0.0
        %462 = vmatpush.msra.mxu0 0.0
        %463 = vmatpush.msra.mxu0 0.0
        %464 = vmatpush.msra.mxu0 %v415
        %465 = vmatmul.f32.gmra.mxu0 %v396
        %v466 = vpop.f32.mrf.mxu0
        %v467 = vadd.f32 0.0, %v466
        %468 = vmatmul.f32.gmra.mxu0 %v399
        %v469 = vpop.f32.mrf.mxu0
        %v470 = vadd.f32 0.0, %v469
        %471 = vmatmul.f32.gmra.mxu0 %v402
        %v472 = vpop.f32.mrf.mxu0
        %v473 = vadd.f32 0.0, %v472
        %474 = vmatmul.f32.gmra.mxu0 %v405
        %v475 = vpop.f32.mrf.mxu0
        %v476 = vadd.f32 0.0, %v475
        %477 = vmatmul.f32.gmra.mxu0 %v408
        %v478 = vpop.f32.mrf.mxu0
        %v479 = vadd.f32 0.0, %v478
        %480 = vdwg.mxu0
        %v481 = vld [vmem:[%s1] sm:$0xff]
        %v482 = vld [vmem:[%s1 + $0x8] sm:$0xff]
        %v483 = vld [vmem:[%s1 + $0x10] sm:$0x1]
        %v484 = vld [vmem:[%s1 + $0x18] sm:$0x1]
        %485 = vrot.lane.b32.xlu0 %v435, 17
        %v486 = vpop.permute.xlu0 %485
        %487 = vrot.lane.b32.xlu0 %v467, 17
        %v488 = vpop.permute.xlu0 %487
        %v489 = vlaneseq
        %v490 = vand.u32 %v489, 127
        %vm491 = vcmp.lt.s32.totalorder %v490, 17
        %v492 = vsel %vm491, %v486, %v488
        %v493 = vsel %vm491, %v488, %v486
        %v494 = vperm.slane %v481, 0
        %v495 = vperm.slane %v482, 0
        %v496 = vmul.f32 %v493, %v494
        %v497 = vmul.f32 %v492, %v495
        %v500 = vrot.slane %v435, 4
        %v501 = vrot.slane %v467, 4
        %504 = vrot.lane.b32.xlu0 %v500, 16
        %v505 = vpop.permute.xlu0 %504
        %506 = vrot.lane.b32.xlu0 %v501, 16
        %v507 = vpop.permute.xlu0 %506
        %vm508 = vcmp.lt.s32.totalorder %v490, 16
        %v509 = vsel %vm508, %v505, %v507
        %v510 = vsel %vm508, %v507, %v505
        %v511 = vperm.slane %v481, 1
        %v512 = vperm.slane %v482, 1
        %v513 = vmul.f32 %v510, %v511
        %v514 = vmul.f32 %v509, %v512
        %v515 = vadd.f32 %v496, %v513
        %v516 = vadd.f32 %v497, %v514
        %517 = vrot.lane.b32.xlu0 %v438, 15
        %v518 = vpop.permute.xlu0 %517
        %519 = vrot.lane.b32.xlu0 %v470, 15
        %v520 = vpop.permute.xlu0 %519
        %vm521 = vcmp.lt.s32.totalorder %v490, 15
        %v522 = vsel %vm521, %v518, %v520
        %v523 = vsel %vm521, %v520, %v518
        %v524 = vperm.slane %v481, 2
        %v525 = vperm.slane %v482, 2
        %v526 = vmul.f32 %v523, %v524
        %v527 = vmul.f32 %v522, %v525
        %v528 = vadd.f32 %v515, %v526
        %v529 = vadd.f32 %v516, %v527
        %v532 = vrot.slane %v438, 4
        %v533 = vrot.slane %v470, 4
        %536 = vrot.lane.b32.xlu0 %v532, 1
        %v537 = vpop.permute.xlu0 %536
        %538 = vrot.lane.b32.xlu0 %v533, 1
        %v539 = vpop.permute.xlu0 %538
        %vm540 = vcmp.lt.s32.totalorder %v490, 1
        %v541 = vsel %vm540, %v537, %v539
        %v542 = vsel %vm540, %v539, %v537
        %v543 = vperm.slane %v481, 3
        %v544 = vperm.slane %v482, 3
        %v545 = vmul.f32 %v542, %v543
        %v546 = vmul.f32 %v541, %v544
        %v547 = vadd.f32 %v528, %v545
        %v548 = vadd.f32 %v529, %v546
        %v549 = vadd.f32 %v547, %v441
        %v550 = vadd.f32 %v548, %v473
        %v553 = vrot.slane %v441, 4
        %v554 = vrot.slane %v473, 4
        %557 = vrot.lane.b32.xlu0 %v553, 127
        %v558 = vpop.permute.xlu0 %557
        %559 = vrot.lane.b32.xlu0 %v554, 127
        %v560 = vpop.permute.xlu0 %559
        %vm561 = vcmp.lt.s32.totalorder %v490, 127
        %v562 = vsel %vm561, %v558, %v560
        %v563 = vsel %vm561, %v560, %v558
        %v564 = vperm.slane %v481, 5
        %v565 = vperm.slane %v482, 5
        %v566 = vmul.f32 %v562, %v564
        %v567 = vmul.f32 %v563, %v565
        %v568 = vadd.f32 %v549, %v566
        %v569 = vadd.f32 %v550, %v567
        %570 = vrot.lane.b32.xlu0 %v444, 113
        %v571 = vpop.permute.xlu0 %570
        %572 = vrot.lane.b32.xlu0 %v476, 113
        %v573 = vpop.permute.xlu0 %572
        %vm574 = vcmp.lt.s32.totalorder %v490, 113
        %v575 = vsel %vm574, %v571, %v573
        %v576 = vsel %vm574, %v573, %v571
        %v577 = vperm.slane %v481, 6
        %v578 = vperm.slane %v482, 6
        %v579 = vmul.f32 %v575, %v577
        %v580 = vmul.f32 %v576, %v578
        %v581 = vadd.f32 %v568, %v579
        %v582 = vadd.f32 %v569, %v580
        %v585 = vrot.slane %v444, 4
        %v586 = vrot.slane %v476, 4
        %589 = vrot.lane.b32.xlu0 %v585, 112
        %v590 = vpop.permute.xlu0 %589
        %591 = vrot.lane.b32.xlu0 %v586, 112
        %v592 = vpop.permute.xlu0 %591
        %vm593 = vcmp.lt.s32.totalorder %v490, 112
        %v594 = vsel %vm593, %v590, %v592
        %v595 = vsel %vm593, %v592, %v590
        %v596 = vperm.slane %v481, 7
        %v597 = vperm.slane %v482, 7
        %v598 = vmul.f32 %v594, %v596
        %v599 = vmul.f32 %v595, %v597
        %v600 = vadd.f32 %v581, %v598
        %v601 = vadd.f32 %v582, %v599
        %602 = vrot.lane.b32.xlu0 %v447, 111
        %v603 = vpop.permute.xlu0 %602
        %604 = vrot.lane.b32.xlu0 %v479, 111
        %v605 = vpop.permute.xlu0 %604
        %vm606 = vcmp.lt.s32.totalorder %v490, 111
        %v607 = vsel %vm606, %v603, %v605
        %v608 = vsel %vm606, %v605, %v603
        %v609 = vperm.slane %v483, 0
        %v610 = vperm.slane %v484, 0
        %v611 = vmul.f32 %v607, %v609
        %v612 = vmul.f32 %v608, %v610
        %v613 = vadd.f32 %v600, %v611
        %v614 = vadd.f32 %v601, %v612
        %v615 = vld [vmem:[%s5] sm:$0xf]
        %617 = vset.pattern.permute.xlu0 0
        %618 = vperm.xlu0 %617, %v615
        %v619 = vpop.permute.xlu0 %618
        %v621 = vadd.f32 %v613, %v619
        %v622 = vadd.f32 %v614, %v619
        %v623 = vmax.f32 %v621, 0.0
        %v624 = vmax.f32 %v622, 0.0
        %v625 = vld [vmem:[%s6] sm:$0xff]
        %v626 = vld [vmem:[%s6 + $0x8] sm:$0xff]
        %v627 = vld [vmem:[%s7] sm:$0xff]
        %v628 = vld [vmem:[%s7 + $0x8] sm:$0xff]
        %v630 = vsel %vm343, %v627, 0
        %v633 = vsel %vm343, %v628, 0
        %635 = vmatpush.msra.mxu0 0.0
        %636 = vmatpush.msra.mxu0 0.0
        %637 = vmatpush.msra.mxu0 0.0
        %638 = vmatpush.msra.mxu0 0.0
        %639 = vmatpush.msra.mxu0 0.0
        %640 = vmatpush.msra.mxu0 0.0
        %641 = vmatpush.msra.mxu0 0.0
        %642 = vmatpush.msra.mxu0 0.0
        %643 = vmatpush.msra.mxu0 0.0
        %644 = vmatpush.msra.mxu0 0.0
        %645 = vmatpush.msra.mxu0 0.0
        %646 = vmatpush.msra.mxu0 0.0
        %647 = vmatpush.msra.mxu0 0.0
        %648 = vmatpush.msra.mxu0 0.0
        %649 = vmatpush.msra.mxu0 0.0
        %650 = vmatpush.msra.mxu0 %v334
        %651 = vmatmul.f32.gmra.mxu0 %v630
        %v652 = vpop.f32.mrf.mxu0
        %v653 = vadd.f32 0.0, %v652
        %654 = vmatmul.f32.gmra.mxu0 %v633
        %v655 = vpop.f32.mrf.mxu0
        %v656 = vadd.f32 0.0, %v655
        %657 = vdwg.mxu0
        %658 = vmatpush.msra.mxu0 0.0
        %659 = vmatpush.msra.mxu0 0.0
        %660 = vmatpush.msra.mxu0 0.0
        %661 = vmatpush.msra.mxu0 0.0
        %662 = vmatpush.msra.mxu0 0.0
        %663 = vmatpush.msra.mxu0 0.0
        %664 = vmatpush.msra.mxu0 0.0
        %665 = vmatpush.msra.mxu0 0.0
        %666 = vmatpush.msra.mxu0 0.0
        %667 = vmatpush.msra.mxu0 0.0
        %668 = vmatpush.msra.mxu0 0.0
        %669 = vmatpush.msra.mxu0 0.0
        %670 = vmatpush.msra.mxu0 0.0
        %671 = vmatpush.msra.mxu0 0.0
        %672 = vmatpush.msra.mxu0 0.0
        %673 = vmatpush.msra.mxu0 %v335
        %674 = vmatmul.f32.gmra.mxu0 %v630
        %v675 = vpop.f32.mrf.mxu0
        %v676 = vadd.f32 0.0, %v675
        %677 = vmatmul.f32.gmra.mxu0 %v633
        %v678 = vpop.f32.mrf.mxu0
        %v679 = vadd.f32 0.0, %v678
        %680 = vdwg.mxu0
        %v682 = vsel %vm394, %v625, 0
        %v685 = vsel %vm394, %v626, 0
        %v688 = vsel %vm410, %v623, 0
        %v691 = vsel %vm410, %v624, 0
        %693 = vmatpush.msra.mxu0 0.0
        %694 = vmatpush.msra.mxu0 0.0
        %695 = vmatpush.msra.mxu0 0.0
        %696 = vmatpush.msra.mxu0 0.0
        %697 = vmatpush.msra.mxu0 0.0
        %698 = vmatpush.msra.mxu0 0.0
        %699 = vmatpush.msra.mxu0 0.0
        %700 = vmatpush.msra.mxu0 0.0
        %701 = vmatpush.msra.mxu0 0.0
        %702 = vmatpush.msra.mxu0 0.0
        %703 = vmatpush.msra.mxu0 0.0
        %704 = vmatpush.msra.mxu0 0.0
        %705 = vmatpush.msra.mxu0 0.0
        %706 = vmatpush.msra.mxu0 0.0
        %707 = vmatpush.msra.mxu0 0.0
        %708 = vmatpush.msra.mxu0 %v688
        %709 = vmatmul.f32.gmra.mxu0 %v682
        %v710 = vpop.f32.mrf.mxu0
        %v711 = vadd.f32 %v653, %v710
        %712 = vmatmul.f32.gmra.mxu0 %v685
        %v713 = vpop.f32.mrf.mxu0
        %v714 = vadd.f32 %v656, %v713
        %715 = vdwg.mxu0
        %716 = vmatpush.msra.mxu0 0.0
        %717 = vmatpush.msra.mxu0 0.0
        %718 = vmatpush.msra.mxu0 0.0
        %719 = vmatpush.msra.mxu0 0.0
        %720 = vmatpush.msra.mxu0 0.0
        %721 = vmatpush.msra.mxu0 0.0
        %722 = vmatpush.msra.mxu0 0.0
        %723 = vmatpush.msra.mxu0 0.0
        %724 = vmatpush.msra.mxu0 0.0
        %725 = vmatpush.msra.mxu0 0.0
        %726 = vmatpush.msra.mxu0 0.0
        %727 = vmatpush.msra.mxu0 0.0
        %728 = vmatpush.msra.mxu0 0.0
        %729 = vmatpush.msra.mxu0 0.0
        %730 = vmatpush.msra.mxu0 0.0
        %731 = vmatpush.msra.mxu0 %v691
        %732 = vmatmul.f32.gmra.mxu0 %v682
        %v733 = vpop.f32.mrf.mxu0
        %v734 = vadd.f32 %v676, %v733
        %735 = vmatmul.f32.gmra.mxu0 %v685
        %v736 = vpop.f32.mrf.mxu0
        %v737 = vadd.f32 %v679, %v736
        %738 = vdwg.mxu0
        %v739 = vld [vmem:[%s8] sm:$0xff]
        %v740 = vld [vmem:[%s8 + $0x8] sm:$0xff]
        %742 = vset.pattern.permute.xlu0 0
        %743 = vperm.xlu0 %742, %v739
        %v744 = vpop.permute.xlu0 %743
        %747 = vset.pattern.permute.xlu0 0
        %748 = vperm.xlu0 %747, %v740
        %v749 = vpop.permute.xlu0 %748
        %v751 = vadd.f32 %v711, %v744
        %v752 = vadd.f32 %v734, %v744
        %v753 = vadd.f32 %v714, %v749
        %v754 = vadd.f32 %v737, %v749
        %v755 = vmax.f32 %v751, 0.0
        %v756 = vmax.f32 %v752, 0.0
        %v757 = vmax.f32 %v753, 0.0
        %v758 = vmax.f32 %v754, 0.0
        %759 = vst [vmem:[%s326] sm:$0xff] %v755
        %760 = vst [vmem:[%s326 + $0x8] sm:$0xff] %v756
        %761 = vst [vmem:[%s326 + $0x10] sm:$0xff] %v757
        %762 = vst [vmem:[%s326 + $0x18] sm:$0xff] %v758
        %s763 = sand.u32 %s225, 1
        %s764 = scalar_lea.sflag [#allocation3], %s763
        %s765 = sand.u32 %s225, 1
        %s766 = smul.addr %s765, 32
        %s767 = scalar_lea.vmem [#allocation2], %s766
        // Predicated region
        $region57: #{tpu_custom_call.1} parent=55 // pred_check
          %p768 = pneg %p235
        $region58: #{tpu_custom_call.1} parent=55 // pred_check_branch
          %770 = sbr.rel (%p768) target = $region60
        $region59: #{tpu_custom_call.1} parent=55 // pred_region
          %s771 = smul.u32 2, %s23
          %773 = vsyncadd %s764, 0
          %s774 = smul.addr %s771, 8
          %s775 = scalar_lea.hbm %s9, %s774
          %s776 = sshll.u32 %s767, 4
          %s777 = int_to_ptr.vmem [resolvable:$true] %s776
          %s778 = sshll.u32 %s775, 4
          %s779 = int_to_ptr.hbm [resolvable:$true] %s778
          %784 = dma.vmem_to_hbm [thread:$0]  %s777, 512, %s779, %s764, 256, 512, 16
        $region60: #{tpu_custom_call.1} parent=55 // pred_fallthru
          _
      $region56: #{tpu_custom_call.1} parent=5 // pred_fallthru
        _
      %p785 = scmp.le.s32.totalorder 2, %s18
      // Predicated region
      $region61: #{tpu_custom_call.1} parent=5 // pred_check
        %p786 = pneg %p785
      $region62: #{tpu_custom_call.1} parent=5 // pred_check_branch
        %788 = sbr.rel (%p786) target = $region64
      $region63: #{tpu_custom_call.1} parent=5 // pred_region
        %s789 = ssub.s32 %s18, 2
        // Predicated region
        $region65: #{tpu_custom_call.1} parent=63 // pred_check
          %p790 = pneg %p241
        $region66: #{tpu_custom_call.1} parent=63 // pred_check_branch
          %792 = sbr.rel (%p790) target = $region68
        $region67: #{tpu_custom_call.1} parent=63 // pred_region
          %s793 = sand.u32 %s226, 1
          %s794 = scalar_lea.sflag [#allocation3], %s793
          %s795 = sand.u32 %s226, 1
          %s796 = smul.addr %s795, 32
          %s797 = scalar_lea.vmem [#allocation2], %s796
          %799 = dma.done %s794, 512
        $region68: #{tpu_custom_call.1} parent=63 // pred_fallthru
          _
      $region64: #{tpu_custom_call.1} parent=5 // pred_fallthru
        _
    $region6: #{tpu_custom_call.1} parent=1 // loop_footer
      %s22 = sadd.s32 1, %s18
    $region7: #{tpu_custom_call.1} parent=1 // loop_footer_branch
      %17 = sbr.rel target = $region3
    $region8: #{tpu_custom_call.1} parent=1 // loop_exit
      _
    %800 = vsyncpa [#allocation3], 1
    %s801 = scalar_lea.sflag [#allocation3], 1
    %802 = vsyncpa %s801, 1

</llo_original>
